<compile_context>
chip_gen: v7x
topology: tpu7x:2x2x1
jax: 0.10.0
libtpu: 0.0.40
codegen_flags: <defaults>
</compile_context>

<pallas_src>
import functools

import jax
import jax.numpy as jnp
from jax.experimental import pallas as pl
from jax.experimental.pallas import tpu as pltpu


def _round_up(x, m):
    return ((x + m - 1) // m) * m


def _vmem_capacity_bytes():
    # Generation-aware VMEM capacity (64 MiB per TC on v7x, 128 MiB v5e/v6e).
    try:
        return int(pltpu.get_tpu_info().vmem_capacity_bytes)
    except Exception:
        return 64 * 1024 * 1024  # conservative default (v7x per-TensorCore)


# ---------------------------------------------------------------------------
# Single-pass kernel: whole (bn, C, HW) slab per grid step.
# ---------------------------------------------------------------------------
def _dmaf_kernel(gamma_ref, rgb_ref, th_ref, w1t_ref, w2t_ref, out_ref):
    # rgb_ref / th_ref / out_ref : (bn, C, HW) VMEM tiles (native dtype)
    # w1t_ref : (C, C//4)   fc1 weight, transposed, pre-scaled by 1/HW
    # w2t_ref : (C//4, C)   fc2 weight, transposed
    # gamma_ref : (1,) SMEM scalar
    rgb = rgb_ref[...].astype(jnp.float32)
    th = th_ref[...].astype(jnp.float32)
    diff = rgb - th                                           # (bn, C, HW)

    # Global average pool over the spatial lanes (1/HW folded into w1t).
    # Mosaic masks the ragged lane tail when HW % 128 != 0.
    gd = jnp.sum(diff, axis=2)                                # (bn, C)

    # Squeeze/excite: C -> C//4 -> C, ReLU then sigmoid (f32 throughout).
    h = jnp.maximum(
        jnp.dot(gd, w1t_ref[...], preferred_element_type=jnp.float32), 0.0
    )                                                         # (bn, C//4)
    logits = jnp.dot(h, w2t_ref[...], preferred_element_type=jnp.float32)
    w = jax.nn.sigmoid(logits)                                # (bn, C)

    gamma = gamma_ref[0]
    a = gamma * w + (1.0 - gamma)                             # (bn, C)
    out_ref[...] = (th + a[:, :, None] * diff).astype(out_ref.dtype)


# ---------------------------------------------------------------------------
# Two-pass fallback kernels (big feature maps): pool pass + blend pass.
# ---------------------------------------------------------------------------
def _pool_kernel(rgb_ref, th_ref, sum_ref, acc_ref, *, hw_total, hw_chunk):
    # rgb_ref / th_ref : (1, C, hw_chunk); sum_ref / acc_ref : (1, C, 1) f32
    h = pl.program_id(1)

    @pl.when(h == 0)
    def _():
        acc_ref[...] = jnp.zeros_like(acc_ref)

    diff = rgb_ref[...].astype(jnp.float32) - th_ref[...].astype(jnp.float32)
    # Mask the ragged tail of the final chunk (out-of-bounds block padding
    # content is unspecified on reads).
    lane = jax.lax.broadcasted_iota(jnp.int32, diff.shape, 2) + h * hw_chunk
    diff = jnp.where(lane < hw_total, diff, 0.0)
    acc_ref[...] += jnp.sum(diff, axis=2, keepdims=True)

    @pl.when(h == pl.num_programs(1) - 1)
    def _():
        sum_ref[...] = acc_ref[...]


def _blend_kernel(a_ref, rgb_ref, th_ref, out_ref):
    # a_ref : (1, C, 1) f32 per-channel gate; rgb/th/out : (1, C, hw_chunk)
    rgb = rgb_ref[...].astype(jnp.float32)
    th = th_ref[...].astype(jnp.float32)
    out_ref[...] = (th + a_ref[...] * (rgb - th)).astype(out_ref.dtype)


# ---------------------------------------------------------------------------
# Wrapper
# ---------------------------------------------------------------------------
@functools.partial(jax.jit, static_argnames=("force_two_pass",))
def dmaf_forward(rgb_feat, thermal_feat, w1, w2, gamma, force_two_pass=False):
    """rgb_feat / thermal_feat: (N, C, H, W).  Returns (N, C, H, W)."""
    N, C, H, W = rgb_feat.shape
    HW = H * W
    in_dt = rgb_feat.dtype
    in_bytes = jnp.dtype(in_dt).itemsize

    # Native-dtype, unpadded slabs: no extra HBM passes around the kernel.
    rgb3 = rgb_feat.reshape(N, C, HW)
    th3 = thermal_feat.reshape(N, C, HW)
    gamma1 = gamma.reshape(1).astype(jnp.float32)

    # VMEM budgeting: 3 tensors x 2 pipeline buffers in the input dtype plus
    # ~3 block-sized f32 temporaries inside the kernel (diff + upcasts).
    cap = _vmem_capacity_bytes()
    vmem_limit = min((cap * 3) // 4, 96 * 1024 * 1024)
    block_budget = (vmem_limit * 4) // 5

    hw_lanes = _round_up(HW, 128)
    c_sub = _round_up(C, 8)
    per_elem = c_sub * hw_lanes * (6 * in_bytes + 3 * 4)
    bn = min(N, block_budget // per_elem)

    if bn >= 1 and not force_two_pass:
        # ---------------- single pass ----------------
        if N >= 2:
            bn = min(bn, (N + 1) // 2)  # >= 2 grid steps keeps both v7x TCs busy
        grid_n = pl.cdiv(N, bn)

        # PyTorch Conv2d(in, out, 1) weight is (out, in, 1, 1); row form:
        #   h = gd_sum @ (W1^T / HW) ; logits = h @ W2^T.
        w1t = jnp.squeeze(w1, axis=(2, 3)).T.astype(jnp.float32) * (1.0 / HW)
        w2t = jnp.squeeze(w2, axis=(2, 3)).T.astype(jnp.float32)

        cost = pl.CostEstimate(
            flops=3 * N * C * HW + 4 * N * C * (C // 4),
            transcendentals=N * C,
            bytes_accessed=3 * N * C * HW * in_bytes,
        )
        out3 = pl.pallas_call(
            _dmaf_kernel,
            out_shape=jax.ShapeDtypeStruct((N, C, HW), in_dt),
            grid_spec=pltpu.PrefetchScalarGridSpec(
                num_scalar_prefetch=0,
                grid=(grid_n,),
                in_specs=[
                    pl.BlockSpec(memory_space=pltpu.MemorySpace.SMEM),     # gamma
                    pl.BlockSpec((bn, C, HW), lambda n: (n, 0, 0)),        # rgb
                    pl.BlockSpec((bn, C, HW), lambda n: (n, 0, 0)),        # thermal
                    pl.BlockSpec((C, C // 4), lambda n: (0, 0)),           # w1^T/HW
                    pl.BlockSpec((C // 4, C), lambda n: (0, 0)),           # w2^T
                ],
                out_specs=pl.BlockSpec((bn, C, HW), lambda n: (n, 0, 0)),
            ),
            compiler_params=pltpu.CompilerParams(
                dimension_semantics=("parallel",),
                vmem_limit_bytes=vmem_limit,
            ),
            cost_estimate=cost,
        )(gamma1, rgb3, th3, w1t, w2t)
        return out3.reshape(N, C, H, W)

    # ---------------- two-pass fallback ----------------
    per_lane = c_sub * (6 * in_bytes + 3 * 4)
    hw_chunk = max(128, (block_budget // per_lane) // 128 * 128)
    if hw_chunk >= HW:
        hw_chunk = HW  # single full-dim chunk (always layout-legal)
    n_chunks = pl.cdiv(HW, hw_chunk)

    # Pass 1: per-(batch, channel) diff sums, HW chunks as a reduction axis.
    pool_cost = pl.CostEstimate(
        flops=2 * N * C * HW,
        transcendentals=0,
        bytes_accessed=2 * N * C * HW * in_bytes,
    )
    sums = pl.pallas_call(
        functools.partial(_pool_kernel, hw_total=HW, hw_chunk=hw_chunk),
        out_shape=jax.ShapeDtypeStruct((N, C, 1), jnp.float32),
        grid_spec=pltpu.PrefetchScalarGridSpec(
            num_scalar_prefetch=0,
            grid=(N, n_chunks),
            in_specs=[
                pl.BlockSpec((1, C, hw_chunk), lambda n, h: (n, 0, h)),
                pl.BlockSpec((1, C, hw_chunk), lambda n, h: (n, 0, h)),
            ],
            out_specs=pl.BlockSpec((1, C, 1), lambda n, h: (n, 0, 0)),
            scratch_shapes=[pltpu.VMEM((1, C, 1), jnp.float32)],
        ),
        compiler_params=pltpu.CompilerParams(
            dimension_semantics=("parallel", "arbitrary"),
            vmem_limit_bytes=vmem_limit,
        ),
        cost_estimate=pool_cost,
    )(rgb3, th3)

    # Tiny squeeze/excite on the (N, C) pooled means: pure JAX (negligible).
    gd = sums[:, :, 0] * (1.0 / HW)                              # (N, C)
    w1m = jnp.squeeze(w1, axis=(2, 3)).astype(jnp.float32)       # (C//4, C)
    w2m = jnp.squeeze(w2, axis=(2, 3)).astype(jnp.float32)       # (C, C//4)
    hid = jnp.maximum(gd @ w1m.T, 0.0)
    wgt = jax.nn.sigmoid(hid @ w2m.T)                            # (N, C)
    g = gamma1[0]
    a = (g * wgt + (1.0 - g))[:, :, None]                        # (N, C, 1) f32

    # Pass 2: fully parallel blend over (batch, HW chunks).
    blend_cost = pl.CostEstimate(
        flops=3 * N * C * HW,
        transcendentals=0,
        bytes_accessed=3 * N * C * HW * in_bytes,
    )
    out3 = pl.pallas_call(
        _blend_kernel,
        out_shape=jax.ShapeDtypeStruct((N, C, HW), in_dt),
        grid_spec=pltpu.PrefetchScalarGridSpec(
            num_scalar_prefetch=0,
            grid=(N, n_chunks),
            in_specs=[
                pl.BlockSpec((1, C, 1), lambda n, h: (n, 0, 0)),           # gate
                pl.BlockSpec((1, C, hw_chunk), lambda n, h: (n, 0, h)),    # rgb
                pl.BlockSpec((1, C, hw_chunk), lambda n, h: (n, 0, h)),    # thermal
            ],
            out_specs=pl.BlockSpec((1, C, hw_chunk), lambda n, h: (n, 0, h)),
        ),
        compiler_params=pltpu.CompilerParams(
            dimension_semantics=("parallel", "parallel"),
            vmem_limit_bytes=vmem_limit,
        ),
        cost_estimate=blend_cost,
    )(a, rgb3, th3)
    return out3.reshape(N, C, H, W)


def dmaf_reference(rgb_feat, thermal_feat, w1, w2, gamma):
    """Pure-JAX reference mirroring the PyTorch module."""
    diff = rgb_feat - thermal_feat
    gd = jnp.mean(diff, axis=(2, 3), keepdims=True)                  # (N,C,1,1)
    w1m = jnp.squeeze(w1, axis=(2, 3))                               # (C//4, C)
    w2m = jnp.squeeze(w2, axis=(2, 3))                               # (C, C//4)
    h = jnp.maximum(jnp.einsum("oc,ncij->noij", w1m, gd), 0.0)
    logits = jnp.einsum("oc,ncij->noij", w2m, h)
    weights = jax.nn.sigmoid(logits)                                 # (N,C,1,1)
    out = rgb_feat * weights + thermal_feat * (1.0 - weights)
    g = gamma.reshape(())
    return out * g + rgb_feat * (1.0 - g)


if __name__ == "__main__":
    # Small shapes consistent with the module (in_channels divisible by 4).
    N, C, H, W = 2, 8, 16, 16

    key = jax.random.PRNGKey(0)
    k_rgb, k_th, k_w1, k_w2 = jax.random.split(key, 4)

    rgb_feat = jax.random.normal(k_rgb, (N, C, H, W), dtype=jnp.float32)
    thermal_feat = jax.random.normal(k_th, (N, C, H, W), dtype=jnp.float32)

    # Conv2d(C, C//4, 1, bias=False), Conv2d(C//4, C, 1, bias=False), gamma (1,).
    w1 = jax.random.normal(k_w1, (C // 4, C, 1, 1), dtype=jnp.float32) * 0.5
    w2 = jax.random.normal(k_w2, (C, C // 4, 1, 1), dtype=jnp.float32) * 0.5
    # nn.Parameter(torch.zeros(1)) would make the fc path a no-op; use a
    # deterministic nonzero gamma so the full compute path is exercised.
    gamma = jnp.array([0.7], dtype=jnp.float32)

    ref = dmaf_reference(rgb_feat, thermal_feat, w1, w2, gamma)

    # Single-pass path.
    out = jax.block_until_ready(dmaf_forward(rgb_feat, thermal_feat, w1, w2, gamma))
    assert out.shape == (N, C, H, W)
    assert jnp.allclose(out, ref, atol=1e-5, rtol=1e-5), (
        float(jnp.max(jnp.abs(out - ref)))
    )

    # Two-pass fallback path (used when a (C, HW) slab per batch element
    # exceeds the VMEM block budget, e.g. big backbone maps on v7x).
    out_tp = jax.block_until_ready(
        dmaf_forward(rgb_feat, thermal_feat, w1, w2, gamma, force_two_pass=True)
    )
    assert jnp.allclose(out_tp, ref, atol=1e-5, rtol=1e-5), (
        float(jnp.max(jnp.abs(out_tp - ref)))
    )

    # Non-multiple-of-128 spatial size: no HBM pad/slice, Mosaic masks the
    # ragged lane tail for the pool and the stores.
    H2, W2 = 10, 10
    rgb2 = jax.random.normal(k_rgb, (N, C, H2, W2), dtype=jnp.float32)
    th2 = jax.random.normal(k_th, (N, C, H2, W2), dtype=jnp.float32)
    ref2 = dmaf_reference(rgb2, th2, w1, w2, gamma)
    out2 = jax.block_until_ready(dmaf_forward(rgb2, th2, w1, w2, gamma))
    assert jnp.allclose(out2, ref2, atol=1e-5, rtol=1e-5), (
        float(jnp.max(jnp.abs(out2 - ref2)))
    )

    print("KERNEL_OK")
</pallas_src>

<mosaic_0001>
module attributes {stable_mosaic.version = 11 : i64} {
  func.func @_dmaf_kernel(%arg0: i32, %arg1: memref<1xf32, #tpu.memory_space<smem>>, %arg2: memref<1x8x256xf32, #tpu.memory_space<vmem>>, %arg3: memref<1x8x256xf32, #tpu.memory_space<vmem>>, %arg4: memref<8x2xf32, #tpu.memory_space<vmem>>, %arg5: memref<2x8xf32, #tpu.memory_space<vmem>>, %arg6: memref<1x8x256xf32, #tpu.memory_space<vmem>>) attributes {dimension_semantics = [#tpu.dimension_semantics<parallel>], iteration_bounds = array<i64: 2>, scalar_prefetch = 0 : i64, scratch_operands = 0 : i64, tpu.core_type = #tpu.core_type<tc>, window_params = [{transform_indices = @transform_0, window_bounds = array<i64: 1>}, {transform_indices = @transform_1, window_bounds = array<i64: 1, 8, 256>}, {transform_indices = @transform_2, window_bounds = array<i64: 1, 8, 256>}, {pipeline_mode = #tpu.pipeline_mode<synchronous>, transform_indices = @transform_3, window_bounds = array<i64: 8, 2>}, {pipeline_mode = #tpu.pipeline_mode<synchronous>, transform_indices = @transform_4, window_bounds = array<i64: 2, 8>}, {transform_indices = @transform_5, window_bounds = array<i64: 1, 8, 256>}]} {
    %c0 = arith.constant 0 : index
    %c0_0 = arith.constant 0 : index
    %c0_1 = arith.constant 0 : index
    %0 = vector.load %arg2[%c0, %c0_0, %c0_1] : memref<1x8x256xf32, #tpu.memory_space<vmem>>, vector<1x8x256xf32>
    %c0_2 = arith.constant 0 : index
    %c0_3 = arith.constant 0 : index
    %c0_4 = arith.constant 0 : index
    %1 = vector.load %arg3[%c0_2, %c0_3, %c0_4] : memref<1x8x256xf32, #tpu.memory_space<vmem>>, vector<1x8x256xf32>
    %2 = arith.subf %0, %1 : vector<1x8x256xf32>
    %cst = arith.constant dense<0.000000e+00> : vector<1x8xf32>
    %3 = vector.multi_reduction <add>, %2, %cst [2] : vector<1x8x256xf32> to vector<1x8xf32>
    %c0_5 = arith.constant 0 : index
    %c0_6 = arith.constant 0 : index
    %4 = vector.load %arg4[%c0_5, %c0_6] : memref<8x2xf32, #tpu.memory_space<vmem>>, vector<8x2xf32>
    %cst_7 = arith.constant dense<0.000000e+00> : vector<1x2xf32>
    %5 = tpu.matmul %3, %4, %cst_7 {dimension_numbers = #tpu.dot_dimension_numbers<[1], [0], [0], [1], [0, 0, 1, 1], [], []>} : vector<1x8xf32>, vector<8x2xf32>, vector<1x2xf32> -> vector<1x2xf32>
    %cst_8 = arith.constant 0.000000e+00 : f32
    %6 = vector.broadcast %cst_8 : f32 to vector<1x2xf32>
    %7 = arith.maximumf %5, %6 : vector<1x2xf32>
    %c0_9 = arith.constant 0 : index
    %c0_10 = arith.constant 0 : index
    %8 = vector.load %arg5[%c0_9, %c0_10] : memref<2x8xf32, #tpu.memory_space<vmem>>, vector<2x8xf32>
    %cst_11 = arith.constant dense<0.000000e+00> : vector<1x8xf32>
    %9 = tpu.matmul %7, %8, %cst_11 {dimension_numbers = #tpu.dot_dimension_numbers<[1], [0], [0], [1], [0, 0, 1, 1], [], []>} : vector<1x2xf32>, vector<2x8xf32>, vector<1x8xf32> -> vector<1x8xf32>
    %10 = arith.negf %9 : vector<1x8xf32>
    %11 = math.exp %10 : vector<1x8xf32>
    %cst_12 = arith.constant 1.000000e+00 : f32
    %12 = vector.broadcast %cst_12 : f32 to vector<1x8xf32>
    %13 = arith.addf %12, %11 : vector<1x8xf32>
    %14 = arith.divf %12, %13 : vector<1x8xf32>
    %c0_13 = arith.constant 0 : index
    %15 = memref.load %arg1[%c0_13] : memref<1xf32, #tpu.memory_space<smem>>
    %16 = vector.broadcast %15 : f32 to vector<1x8xf32>
    %17 = arith.mulf %16, %14 : vector<1x8xf32>
    %cst_14 = arith.constant 1.000000e+00 : f32
    %18 = arith.subf %cst_14, %15 : f32
    %19 = vector.broadcast %18 : f32 to vector<1x8xf32>
    %20 = arith.addf %17, %19 : vector<1x8xf32>
    %21 = vector.shape_cast %20 : vector<1x8xf32> to vector<1x8x1xf32>
    %22 = vector.broadcast %21 : vector<1x8x1xf32> to vector<1x8x256xf32>
    %23 = arith.mulf %22, %2 : vector<1x8x256xf32>
    %24 = arith.addf %1, %23 : vector<1x8x256xf32>
    %c0_15 = arith.constant 0 : index
    %c0_16 = arith.constant 0 : index
    %c0_17 = arith.constant 0 : index
    %25 = vector.load %arg6[%c0_15, %c0_16, %c0_17] : memref<1x8x256xf32, #tpu.memory_space<vmem>>, vector<1x8x256xf32>
    tpu.vector_store %arg6[%c0_15, %c0_16, %c0_17], %24 {strides = array<i32>} : memref<1x8x256xf32, #tpu.memory_space<vmem>>, vector<1x8x256xf32>,
    return
  }
  func.func @transform_0(%arg0: i32) -> i32 {
    %c0_i32 = arith.constant 0 : i32
    %c0_i32_0 = arith.constant 0 : i32
    return %c0_i32 : i32
  }
  func.func @transform_1(%arg0: i32) -> (i32, i32, i32) {
    %c0_i32 = arith.constant 0 : i32
    %c0_i32_0 = arith.constant 0 : i32
    %c0_i32_1 = arith.constant 0 : i32
    return %arg0, %c0_i32, %c0_i32_0 : i32, i32, i32
  }
  func.func @transform_2(%arg0: i32) -> (i32, i32, i32) {
    %c0_i32 = arith.constant 0 : i32
    %c0_i32_0 = arith.constant 0 : i32
    %c0_i32_1 = arith.constant 0 : i32
    return %arg0, %c0_i32, %c0_i32_0 : i32, i32, i32
  }
  func.func @transform_3(%arg0: i32) -> (i32, i32) {
    %c0_i32 = arith.constant 0 : i32
    %c0_i32_0 = arith.constant 0 : i32
    %c0_i32_1 = arith.constant 0 : i32
    return %c0_i32, %c0_i32_0 : i32, i32
  }
  func.func @transform_4(%arg0: i32) -> (i32, i32) {
    %c0_i32 = arith.constant 0 : i32
    %c0_i32_0 = arith.constant 0 : i32
    %c0_i32_1 = arith.constant 0 : i32
    return %c0_i32, %c0_i32_0 : i32, i32
  }
  func.func @transform_5(%arg0: i32) -> (i32, i32, i32) {
    %c0_i32 = arith.constant 0 : i32
    %c0_i32_0 = arith.constant 0 : i32
    %c0_i32_1 = arith.constant 0 : i32
    return %arg0, %c0_i32, %c0_i32_0 : i32, i32, i32
  }
}

</mosaic_0001>

<llo_original>
// kernel: dmaf_forward.1
$region0: #{dmaf_forward.1}
  #allocation0 [shape = 'u32[]', space=smem, size = 0x4, offset = 0x4, fixed_abs, tag = 'smem constant byte address 0x4 - core index']
  #allocation1 [shape = 'u32[144,128]{1,0:T(1,128)}', space=vmem, size = 0x12000, scoped, tag = 'internal scratch']
  #allocation2 [shape = 'f32[1]{0:T(128)S(6)}', space=smem, size = 0x200, scoped, tag = 'scoped memory for dmaf_forward.1']
  %s0 = inlined_call_operand.<no memory space> [shape: f32[1], index: 0, kind: input, shape index: {}]
  %s1 = inlined_call_operand.vmem [shape: f32[2,8,256], index: 1, kind: input, shape index: {}]
  %s2 = inlined_call_operand.vmem [shape: f32[2,8,256], index: 2, kind: input, shape index: {}]
  %s3 = inlined_call_operand.vmem [shape: f32[8,2], index: 3, kind: input, shape index: {}]
  %s4 = inlined_call_operand.vmem [shape: f32[2,8], index: 4, kind: input, shape index: {}]
  %s5 = inlined_call_operand.vmem [shape: f32[2,8,256], index: 5, kind: output, shape index: {}]
  %s6 = sld [smem:[#allocation0]]
  $region53: #{dmaf_forward.1} parent=0
    _
  %s8 = ssub.s32 1, %s6
  %s9 = scalar_select 0, %s8, %s6
  %10 = sst [smem:[#allocation2]] %s0
  loop: start=0, step=1, limit=4
  $region2: #{dmaf_forward.1} parent=0 // loop_pre_header
    _
  $region3: #{dmaf_forward.1} parent=0 // loop_header
    %s12 = sphi 0, %s16
    %p13 = scmp.ge.s32.totalorder %s12, 4
    %s20 = sphi 0, %s20
    %s22 = sphi 0, %s20
    %s23 = sphi 0, %s22
    %s37 = sphi 0, %s23
    %s43 = sphi 0, %s45
    %s46 = sphi 0, %s43
    %s47 = sphi 0, %s46
    %s63 = sphi 0, %s47
    %s69 = sphi 0, %s71
    %s72 = sphi 0, %s69
    %s73 = sphi 0, %s72
    %s89 = sphi 0, %s73
    %s93 = sphi 0, %s93
    %s95 = sphi 0, %s93
    %s96 = sphi 0, %s95
    %s110 = sphi 0, %s96
    %s114 = sphi 0, %s114
    %s116 = sphi 0, %s114
    %s117 = sphi 0, %s116
    %s131 = sphi 0, %s117
    %s137 = sphi 0, %s139
    %s140 = sphi 0, %s137
    %s141 = sphi 0, %s140
    %s157 = sphi 0, %s141
  $region4: #{dmaf_forward.1} parent=0 // loop_header_branch
    %15 = sbr.rel (%p13) target = $region8
  $region5: #{dmaf_forward.1} parent=0 // loop_body
    %s17 = ssub.s32 %s12, 1
    %s18 = ssub.s32 %s12, 2
    %s19 = sadd.s32 %s12, 1
    %s21 = sadd.s32 %s20, 1
    %p24 = scmp.eq.s32.totalorder %s12, 1
    %p25 = scmp.ne.s32.totalorder %s20, %s22
    %p26 = scmp.eq.s32.totalorder %s12, 0
    %p27 = por %p25, %p26
    %p28 = scmp.ne.s32.totalorder %s20, %s22
    %p29 = scmp.eq.s32.totalorder %s17, 1
    %p30 = por %p28, %p29
    %p31 = scmp.ne.s32.totalorder %s22, %s23
    %p32 = scmp.eq.s32.totalorder %s17, 0
    %p33 = por %p31, %p32
    %p34 = scmp.ne.s32.totalorder %s22, %s23
    %p35 = scmp.eq.s32.totalorder %s18, 1
    %p36 = por %p34, %p35
    %p38 = scmp.ne.s32.totalorder %s23, %s37
    %p39 = scmp.eq.s32.totalorder %s18, 0
    %p40 = por %p38, %p39
    %s41 = ssub.s32 %s12, %s19
    %p42 = scmp.eq.s32.totalorder %s41, 0
    %s44 = sadd.s32 %s43, 1
    %s45 = scalar_select %p42, %s43, %s44
    %p48 = pneg %p42
    %p49 = scmp.eq.s32.totalorder %s12, 1
    %p50 = por %p48, %p49
    %p51 = scmp.ne.s32.totalorder %s43, %s46
    %p52 = scmp.eq.s32.totalorder %s12, 0
    %p53 = por %p51, %p52
    %p54 = scmp.ne.s32.totalorder %s43, %s46
    %p55 = scmp.eq.s32.totalorder %s17, 1
    %p56 = por %p54, %p55
    %p57 = scmp.ne.s32.totalorder %s46, %s47
    %p58 = scmp.eq.s32.totalorder %s17, 0
    %p59 = por %p57, %p58
    %p60 = scmp.ne.s32.totalorder %s46, %s47
    %p61 = scmp.eq.s32.totalorder %s18, 1
    %p62 = por %p60, %p61
    %p64 = scmp.ne.s32.totalorder %s47, %s63
    %p65 = scmp.eq.s32.totalorder %s18, 0
    %p66 = por %p64, %p65
    %s67 = ssub.s32 %s12, %s19
    %p68 = scmp.eq.s32.totalorder %s67, 0
    %s70 = sadd.s32 %s69, 1
    %s71 = scalar_select %p68, %s69, %s70
    %p74 = pneg %p68
    %p75 = scmp.eq.s32.totalorder %s12, 1
    %p76 = por %p74, %p75
    %p77 = scmp.ne.s32.totalorder %s69, %s72
    %p78 = scmp.eq.s32.totalorder %s12, 0
    %p79 = por %p77, %p78
    %p80 = scmp.ne.s32.totalorder %s69, %s72
    %p81 = scmp.eq.s32.totalorder %s17, 1
    %p82 = por %p80, %p81
    %p83 = scmp.ne.s32.totalorder %s72, %s73
    %p84 = scmp.eq.s32.totalorder %s17, 0
    %p85 = por %p83, %p84
    %p86 = scmp.ne.s32.totalorder %s72, %s73
    %p87 = scmp.eq.s32.totalorder %s18, 1
    %p88 = por %p86, %p87
    %p90 = scmp.ne.s32.totalorder %s73, %s89
    %p91 = scmp.eq.s32.totalorder %s18, 0
    %p92 = por %p90, %p91
    %s94 = sadd.s32 %s93, 1
    %p97 = scmp.eq.s32.totalorder %s12, 1
    %p98 = scmp.ne.s32.totalorder %s93, %s95
    %p99 = scmp.eq.s32.totalorder %s12, 0
    %p100 = por %p98, %p99
    %p101 = scmp.ne.s32.totalorder %s93, %s95
    %p102 = scmp.eq.s32.totalorder %s17, 1
    %p103 = por %p101, %p102
    %p104 = scmp.ne.s32.totalorder %s95, %s96
    %p105 = scmp.eq.s32.totalorder %s17, 0
    %p106 = por %p104, %p105
    %p107 = scmp.ne.s32.totalorder %s95, %s96
    %p108 = scmp.eq.s32.totalorder %s18, 1
    %p109 = por %p107, %p108
    %p111 = scmp.ne.s32.totalorder %s96, %s110
    %p112 = scmp.eq.s32.totalorder %s18, 0
    %p113 = por %p111, %p112
    %s115 = sadd.s32 %s114, 1
    %p118 = scmp.eq.s32.totalorder %s12, 1
    %p119 = scmp.ne.s32.totalorder %s114, %s116
    %p120 = scmp.eq.s32.totalorder %s12, 0
    %p121 = por %p119, %p120
    %p122 = scmp.ne.s32.totalorder %s114, %s116
    %p123 = scmp.eq.s32.totalorder %s17, 1
    %p124 = por %p122, %p123
    %p125 = scmp.ne.s32.totalorder %s116, %s117
    %p126 = scmp.eq.s32.totalorder %s17, 0
    %p127 = por %p125, %p126
    %p128 = scmp.ne.s32.totalorder %s116, %s117
    %p129 = scmp.eq.s32.totalorder %s18, 1
    %p130 = por %p128, %p129
    %p132 = scmp.ne.s32.totalorder %s117, %s131
    %p133 = scmp.eq.s32.totalorder %s18, 0
    %p134 = por %p132, %p133
    %s135 = ssub.s32 %s12, %s19
    %p136 = scmp.eq.s32.totalorder %s135, 0
    %s138 = sadd.s32 %s137, 1
    %s139 = scalar_select %p136, %s137, %s138
    %p142 = pneg %p136
    %p143 = scmp.eq.s32.totalorder %s12, 1
    %p144 = por %p142, %p143
    %p145 = scmp.ne.s32.totalorder %s137, %s140
    %p146 = scmp.eq.s32.totalorder %s12, 0
    %p147 = por %p145, %p146
    %p148 = scmp.ne.s32.totalorder %s137, %s140
    %p149 = scmp.eq.s32.totalorder %s17, 1
    %p150 = por %p148, %p149
    %p151 = scmp.ne.s32.totalorder %s140, %s141
    %p152 = scmp.eq.s32.totalorder %s17, 0
    %p153 = por %p151, %p152
    %p154 = scmp.ne.s32.totalorder %s140, %s141
    %p155 = scmp.eq.s32.totalorder %s18, 1
    %p156 = por %p154, %p155
    %p158 = scmp.ne.s32.totalorder %s141, %s157
    %p159 = scmp.eq.s32.totalorder %s18, 0
    %p160 = por %p158, %p159
    %p161 = scmp.le.s32.totalorder 1, %s12
    %p162 = scmp.lt.s32.totalorder %s12, 3
    %p163 = pnand %p161, %p162
    %p164 = pneg %p163
    // Predicated region
    $region9: #{dmaf_forward.1} parent=5 // pred_check
      _
    $region10: #{dmaf_forward.1} parent=5 // pred_check_branch
      %166 = sbr.rel (%p163) target = $region12
    $region11: #{dmaf_forward.1} parent=5 // pred_region
      %s167 = ssub.s32 %s12, 1
      // Predicated region
      $region13: #{dmaf_forward.1} parent=11 // pred_check
        %p168 = pneg %p33
      $region14: #{dmaf_forward.1} parent=11 // pred_check_branch
        %170 = sbr.rel (%p168) target = $region16
      $region15: #{dmaf_forward.1} parent=11 // pred_region
        _
      $region16: #{dmaf_forward.1} parent=11 // pred_fallthru
        _
      // Predicated region
      $region17: #{dmaf_forward.1} parent=11 // pred_check
        %p171 = pneg %p106
      $region18: #{dmaf_forward.1} parent=11 // pred_check_branch
        %173 = sbr.rel (%p171) target = $region20
      $region19: #{dmaf_forward.1} parent=11 // pred_region
        _
      $region20: #{dmaf_forward.1} parent=11 // pred_fallthru
        _
      // Predicated region
      $region21: #{dmaf_forward.1} parent=11 // pred_check
        %p174 = pneg %p127
      $region22: #{dmaf_forward.1} parent=11 // pred_check_branch
        %176 = sbr.rel (%p174) target = $region24
      $region23: #{dmaf_forward.1} parent=11 // pred_region
        _
      $region24: #{dmaf_forward.1} parent=11 // pred_fallthru
        _
    $region12: #{dmaf_forward.1} parent=5 // pred_fallthru
      _
    %p177 = scmp.lt.s32.totalorder %s12, 2
    // Predicated region
    $region25: #{dmaf_forward.1} parent=5 // pred_check
      %p178 = pneg %p177
    $region26: #{dmaf_forward.1} parent=5 // pred_check_branch
      %180 = sbr.rel (%p178) target = $region28
    $region27: #{dmaf_forward.1} parent=5 // pred_region
      // Predicated region
      $region29: #{dmaf_forward.1} parent=27 // pred_check
        %p181 = pneg %p53
      $region30: #{dmaf_forward.1} parent=27 // pred_check_branch
        %183 = sbr.rel (%p181) target = $region32
      $region31: #{dmaf_forward.1} parent=27 // pred_region
        %p184 = scmp.lt.s32.totalorder %s12, 1
        %s185 = scalar_select %p184, %s12, 1
        %s186 = smul.addr %s185, 2
        %s187 = smul.addr %s186, 8
        %s188 = scalar_lea.vmem %s1, %s187
      $region32: #{dmaf_forward.1} parent=27 // pred_fallthru
        _
      // Predicated region
      $region33: #{dmaf_forward.1} parent=27 // pred_check
        %p189 = pneg %p79
      $region34: #{dmaf_forward.1} parent=27 // pred_check_branch
        %191 = sbr.rel (%p189) target = $region36
      $region35: #{dmaf_forward.1} parent=27 // pred_region
        %p192 = scmp.lt.s32.totalorder %s12, 1
        %s193 = scalar_select %p192, %s12, 1
        %s194 = smul.addr %s193, 2
        %s195 = smul.addr %s194, 8
        %s196 = scalar_lea.vmem %s2, %s195
      $region36: #{dmaf_forward.1} parent=27 // pred_fallthru
        _
    $region28: #{dmaf_forward.1} parent=5 // pred_fallthru
      _
    %p197 = scmp.le.s32.totalorder 1, %s12
    %p198 = scmp.lt.s32.totalorder %s12, 3
    %p199 = pnand %p197, %p198
    %p200 = pneg %p199
    // Predicated region
    $region37: #{dmaf_forward.1} parent=5 // pred_check
      _
    $region38: #{dmaf_forward.1} parent=5 // pred_check_branch
      %202 = sbr.rel (%p199) target = $region40
    $region39: #{dmaf_forward.1} parent=5 // pred_region
      %s203 = ssub.s32 %s12, 1
      %p204 = pneg %p33
      %p205 = pneg %p30
      %p206 = scmp.lt.s32.totalorder %s17, 1
      %s207 = scalar_select %p206, %s17, 1
      %s208 = smul.addr %s207, 2
      %s209 = smul.addr %s208, 8
      %s210 = scalar_lea.vmem %s1, %s209
      %p211 = pneg %p59
      %p212 = pneg %p56
      %p213 = scmp.lt.s32.totalorder %s17, 1
      %s214 = scalar_select %p213, %s17, 1
      %s215 = smul.addr %s214, 2
      %s216 = smul.addr %s215, 8
      %s217 = scalar_lea.vmem %s2, %s216
      %p218 = pneg %p85
      %p219 = pneg %p82
      %p220 = pneg %p106
      %p221 = pneg %p103
      %p222 = pneg %p127
      %p223 = pneg %p124
      %p224 = pneg %p153
      %p225 = pneg %p150
      %p226 = scmp.lt.s32.totalorder %s17, 1
      %s227 = scalar_select %p226, %s17, 1
      %s228 = smul.addr %s227, 2
      %s229 = smul.addr %s228, 8
      %s230 = scalar_lea.vmem %s5, %s229
      %p231 = scmp.lt.s32.totalorder %s17, 1
      %s232 = scalar_select %p231, %s17, 1
      %s233 = smul.addr %s232, 2
      %s234 = smul.addr %s233, 8
      %s235 = scalar_lea.vmem %s1, %s234
      %p236 = scmp.lt.s32.totalorder %s17, 1
      %s237 = scalar_select %p236, %s17, 1
      %s238 = smul.addr %s237, 2
      %s239 = smul.addr %s238, 8
      %s240 = scalar_lea.vmem %s2, %s239
      %p241 = scmp.lt.s32.totalorder %s17, 1
      %s242 = scalar_select %p241, %s17, 1
      %s243 = smul.addr %s242, 2
      %s244 = smul.addr %s243, 8
      %s245 = scalar_lea.vmem %s5, %s244
      %v246 = vld [vmem:[%s235] sm:$0xff]
      %v247 = vld [vmem:[%s235 + $0x8] sm:$0xff]
      %v248 = vld [vmem:[%s240] sm:$0xff]
      %v249 = vld [vmem:[%s240 + $0x8] sm:$0xff]
      %v250 = vsub.f32 %v246, %v248
      %v251 = vsub.f32 %v247, %v249
      %v252 = vadd.f32 %v250, %v251
      %253 = vadd.xlane.f32.xlu0 %v252
      %v254 = vpop.xlane.xlu0 %253
      %v255 = vld [vmem:[%s3] sm:$0xff]
      %v257 = vlaneseq
      %v258 = vand.u32 %v257, 127
      %v259 = vlaneseq
      %v260 = vshrl.u32 %v259, 7
      %v261 = vsub.s32 %v258, %v260
      %v262 = vrot.slane %v254, %v261
      %vm263 = vcmask 64512
      %v264 = vsel %vm263, %v262, 0
      %266 = vmatprep.subr.mxu0 0.0
      %267 = vmatpush1.msra.mxu0 %v255
      %268 = vmatprep.subr.mxu0 0.0
      %269 = vmatpush1.msra.mxu0 0.0
      %270 = vmatprep.subr.mxu0 0.0
      %271 = vmatpush1.msra.mxu0 0.0
      %272 = vmatprep.subr.mxu0 0.0
      %273 = vmatpush1.msra.mxu0 0.0
      %274 = vmatprep.subr.mxu0 0.0
      %275 = vmatpush1.msra.mxu0 0.0
      %276 = vmatprep.subr.mxu0 0.0
      %277 = vmatpush1.msra.mxu0 0.0
      %278 = vmatprep.subr.mxu0 0.0
      %279 = vmatpush1.msra.mxu0 0.0
      %280 = vmatprep.subr.mxu0 0.0
      %281 = vmatpush1.msra.mxu0 0.0
      %282 = vmatprep.subr.mxu0 0.0
      %283 = vmatpush1.msra.mxu0 0.0
      %284 = vmatprep.subr.mxu0 0.0
      %285 = vmatpush1.msra.mxu0 0.0
      %286 = vmatprep.subr.mxu0 0.0
      %287 = vmatpush1.msra.mxu0 0.0
      %288 = vmatprep.subr.mxu0 0.0
      %289 = vmatpush1.msra.mxu0 0.0
      %290 = vmatprep.subr.mxu0 0.0
      %291 = vmatpush1.msra.mxu0 0.0
      %292 = vmatprep.subr.mxu0 0.0
      %293 = vmatpush1.msra.mxu0 0.0
      %294 = vmatprep.subr.mxu0 0.0
      %295 = vmatpush1.msra.mxu0 0.0
      %296 = vmatprep.subr.mxu0 0.0
      %297 = vmatpush1.msra.mxu0 0.0
      %298 = vmatprep.subr.mxu0 0.0
      %299 = vmatpush1.msra.mxu0 0.0
      %300 = vmatprep.subr.mxu0 0.0
      %301 = vmatpush1.msra.mxu0 0.0
      %302 = vmatprep.subr.mxu0 0.0
      %303 = vmatpush1.msra.mxu0 0.0
      %304 = vmatprep.subr.mxu0 0.0
      %305 = vmatpush1.msra.mxu0 0.0
      %306 = vmatprep.subr.mxu0 0.0
      %307 = vmatpush1.msra.mxu0 0.0
      %308 = vmatprep.subr.mxu0 0.0
      %309 = vmatpush1.msra.mxu0 0.0
      %310 = vmatprep.subr.mxu0 0.0
      %311 = vmatpush1.msra.mxu0 0.0
      %312 = vmatprep.subr.mxu0 0.0
      %313 = vmatpush1.msra.mxu0 0.0
      %314 = vmatprep.subr.mxu0 0.0
      %315 = vmatpush1.msra.mxu0 0.0
      %316 = vmatprep.subr.mxu0 0.0
      %317 = vmatpush1.msra.mxu0 0.0
      %318 = vmatprep.subr.mxu0 0.0
      %319 = vmatpush1.msra.mxu0 0.0
      %320 = vmatprep.subr.mxu0 0.0
      %321 = vmatpush1.msra.mxu0 0.0
      %322 = vmatprep.subr.mxu0 0.0
      %323 = vmatpush1.msra.mxu0 0.0
      %324 = vmatprep.subr.mxu0 0.0
      %325 = vmatpush1.msra.mxu0 0.0
      %326 = vmatprep.subr.mxu0 0.0
      %327 = vmatpush1.msra.mxu0 0.0
      %328 = vmatprep.subr.mxu0 0.0
      %329 = vmatpush1.msra.mxu0 0.0
      %330 = vmatprep.mubr.f32.mxu0 0.0
      %331 = vmatmul.mubr.f32.gmra.mrb[0].mxu0 %v264
      %v332 = vpop.f32.mrb[0].mxu0
      %v333 = vadd.f32 0.0, %v332
      %v334 = vpop.f32.mrb[0].mxu0
      %335 = vdwg.mxu0
      %v336 = vmax.f32 %v333, 0.0
      %v337 = vld [vmem:[%s4] sm:$0x3]
      %vm338 = vcmask 15360
      %v340 = vsel %vm338, %v336, 0
      %vm342 = vcmask 1041408
      %v344 = vsel %vm342, %v337, 0
      %346 = vmatprep.subr.mxu0 0.0
      %347 = vmatpush1.msra.mxu0 %v344
      %348 = vmatprep.subr.mxu0 0.0
      %349 = vmatpush1.msra.mxu0 0.0
      %350 = vmatprep.subr.mxu0 0.0
      %351 = vmatpush1.msra.mxu0 0.0
      %352 = vmatprep.subr.mxu0 0.0
      %353 = vmatpush1.msra.mxu0 0.0
      %354 = vmatprep.subr.mxu0 0.0
      %355 = vmatpush1.msra.mxu0 0.0
      %356 = vmatprep.subr.mxu0 0.0
      %357 = vmatpush1.msra.mxu0 0.0
      %358 = vmatprep.subr.mxu0 0.0
      %359 = vmatpush1.msra.mxu0 0.0
      %360 = vmatprep.subr.mxu0 0.0
      %361 = vmatpush1.msra.mxu0 0.0
      %362 = vmatprep.subr.mxu0 0.0
      %363 = vmatpush1.msra.mxu0 0.0
      %364 = vmatprep.subr.mxu0 0.0
      %365 = vmatpush1.msra.mxu0 0.0
      %366 = vmatprep.subr.mxu0 0.0
      %367 = vmatpush1.msra.mxu0 0.0
      %368 = vmatprep.subr.mxu0 0.0
      %369 = vmatpush1.msra.mxu0 0.0
      %370 = vmatprep.subr.mxu0 0.0
      %371 = vmatpush1.msra.mxu0 0.0
      %372 = vmatprep.subr.mxu0 0.0
      %373 = vmatpush1.msra.mxu0 0.0
      %374 = vmatprep.subr.mxu0 0.0
      %375 = vmatpush1.msra.mxu0 0.0
      %376 = vmatprep.subr.mxu0 0.0
      %377 = vmatpush1.msra.mxu0 0.0
      %378 = vmatprep.subr.mxu0 0.0
      %379 = vmatpush1.msra.mxu0 0.0
      %380 = vmatprep.subr.mxu0 0.0
      %381 = vmatpush1.msra.mxu0 0.0
      %382 = vmatprep.subr.mxu0 0.0
      %383 = vmatpush1.msra.mxu0 0.0
      %384 = vmatprep.subr.mxu0 0.0
      %385 = vmatpush1.msra.mxu0 0.0
      %386 = vmatprep.subr.mxu0 0.0
      %387 = vmatpush1.msra.mxu0 0.0
      %388 = vmatprep.subr.mxu0 0.0
      %389 = vmatpush1.msra.mxu0 0.0
      %390 = vmatprep.subr.mxu0 0.0
      %391 = vmatpush1.msra.mxu0 0.0
      %392 = vmatprep.subr.mxu0 0.0
      %393 = vmatpush1.msra.mxu0 0.0
      %394 = vmatprep.subr.mxu0 0.0
      %395 = vmatpush1.msra.mxu0 0.0
      %396 = vmatprep.subr.mxu0 0.0
      %397 = vmatpush1.msra.mxu0 0.0
      %398 = vmatprep.subr.mxu0 0.0
      %399 = vmatpush1.msra.mxu0 0.0
      %400 = vmatprep.subr.mxu0 0.0
      %401 = vmatpush1.msra.mxu0 0.0
      %402 = vmatprep.subr.mxu0 0.0
      %403 = vmatpush1.msra.mxu0 0.0
      %404 = vmatprep.subr.mxu0 0.0
      %405 = vmatpush1.msra.mxu0 0.0
      %406 = vmatprep.subr.mxu0 0.0
      %407 = vmatpush1.msra.mxu0 0.0
      %408 = vmatprep.subr.mxu0 0.0
      %409 = vmatpush1.msra.mxu0 0.0
      %410 = vmatprep.mubr.f32.mxu0 0.0
      %411 = vmatmul.mubr.f32.gmra.mrb[0].mxu0 %v340
      %v412 = vpop.f32.mrb[0].mxu0
      %v413 = vadd.f32 0.0, %v412
      %v414 = vpop.f32.mrb[0].mxu0
      %415 = vdwg.mxu0
      %v416 = vxor.u32 %v413, 2147483648
      %v417 = vmul.f32 %v416, 1.442695
      %v418 = vpow.pop %v417
      %v419 = vadd.f32 %v418, 1.0
      %v420 = vrcp.pop %v419
      %v421 = vmul.f32 1.0, %v420
      %s422 = sld [smem:[#allocation2]]
      %v423 = vstv %s422
      %v424 = vmul.f32 %v423, %v421
      %s425 = ssub.f32 1.0, %s422
      %v426 = vstv %s425
      %v427 = vadd.f32 %v424, %v426
      %v428 = vlaneseq
      %v429 = vshrl.u32 %v428, 7
      %v430 = vsub.s32 0, %v429
      %v431 = vrot.slane %v427, %v430
      %433 = vbcast.lane.b32.xlu0 %v431, 256
      %v434 = vpop.permute.xlu0 %433
      %v435 = vmul.f32 %v434, %v250
      %v436 = vmul.f32 %v434, %v251
      %v437 = vadd.f32 %v248, %v435
      %v438 = vadd.f32 %v249, %v436
      %439 = vst [vmem:[%s245] sm:$0xff] %v437
      %440 = vst [vmem:[%s245 + $0x8] sm:$0xff] %v438
      %p441 = scmp.lt.s32.totalorder %s17, 1
      %s442 = scalar_select %p441, %s17, 1
      %s443 = smul.addr %s442, 2
      %s444 = smul.addr %s443, 8
      %s445 = scalar_lea.vmem %s5, %s444
      // Predicated region
      $region41: #{dmaf_forward.1} parent=39 // pred_check
        %p446 = pneg %p150
      $region42: #{dmaf_forward.1} parent=39 // pred_check_branch
        %448 = sbr.rel (%p446) target = $region44
      $region43: #{dmaf_forward.1} parent=39 // pred_region
        _
      $region44: #{dmaf_forward.1} parent=39 // pred_fallthru
        _
    $region40: #{dmaf_forward.1} parent=5 // pred_fallthru
      _
    %p449 = scmp.le.s32.totalorder 2, %s12
    // Predicated region
    $region45: #{dmaf_forward.1} parent=5 // pred_check
      %p450 = pneg %p449
    $region46: #{dmaf_forward.1} parent=5 // pred_check_branch
      %452 = sbr.rel (%p450) target = $region48
    $region47: #{dmaf_forward.1} parent=5 // pred_region
      %s453 = ssub.s32 %s12, 2
      // Predicated region
      $region49: #{dmaf_forward.1} parent=47 // pred_check
        %p454 = pneg %p156
      $region50: #{dmaf_forward.1} parent=47 // pred_check_branch
        %456 = sbr.rel (%p454) target = $region52
      $region51: #{dmaf_forward.1} parent=47 // pred_region
        %p457 = scmp.lt.s32.totalorder %s18, 1
        %s458 = scalar_select %p457, %s18, 1
        %s459 = smul.addr %s458, 2
        %s460 = smul.addr %s459, 8
        %s461 = scalar_lea.vmem %s5, %s460
      $region52: #{dmaf_forward.1} parent=47 // pred_fallthru
        _
    $region48: #{dmaf_forward.1} parent=5 // pred_fallthru
      _
  $region6: #{dmaf_forward.1} parent=0 // loop_footer
    %s16 = sadd.s32 1, %s12
  $region7: #{dmaf_forward.1} parent=0 // loop_footer_branch
    %11 = sbr.rel target = $region3
  $region8: #{dmaf_forward.1} parent=0 // loop_exit
    _

</llo_original>
